<compile_context>
chip_gen: v7x
topology: tpu7x:2x2x1
jax: 0.10.0
libtpu: 0.0.40
codegen_flags: <defaults>
</compile_context>

<pallas_src>
import jax
import jax.numpy as jnp
from jax import lax
from jax.experimental import pallas as pl
from jax.experimental.pallas import tpu as pltpu

KSIZE = 3
PAD = 1
N_SLOPE = 0.01
HALO = KSIZE - 1          # vertical halo rows needed per row tile
HALO_BLOCK = 8            # sublane-aligned block used to fetch the halo rows


def conv_block_kernel(xm_ref, xh_ref, m_ref, b_ref, o_ref):
    """One (batch, row-tile) grid step.

    xm_ref: (TH, W*Cin)         main padded-input rows of this tile (bf16)
    xh_ref: (8,  W*Cin)         next 8 rows; only the first 2 (halo) are used
    m_ref : (3, W*Cin, W*Cout)  banded weights, VMEM-resident across the grid
    b_ref : (1, W*Cout)         bias broadcast over the W axis (f32)
    o_ref : (TH, W*Cout)        output rows (lane-dense store)
    """
    th = xm_ref.shape[0]
    wcout = o_ref.shape[-1]

    # Assemble the TH+2 padded rows this tile needs (2-row vertical halo).
    x_full = jnp.concatenate([xm_ref[...], xh_ref[0:HALO, :]], axis=0)

    # Bias folded into the accumulator init (no separate full-tile VPU pass).
    acc = jnp.broadcast_to(b_ref[...], (th, wcout)).astype(jnp.float32)
    for kh in range(KSIZE):
        acc = acc + jnp.dot(x_full[kh:kh + th, :], m_ref[kh],
                            preferred_element_type=jnp.float32)

    # LeakyReLU(0.01) epilogue in f32, cast at the (lane-dense) store.
    o_ref[...] = jnp.where(acc >= 0.0, acc, N_SLOPE * acc).astype(o_ref.dtype)


def spectral_normalize(weight_oihw, n_iter=10, eps=1e-12):
    """Power-iteration spectral norm on W reshaped to (out_ch, in_ch*k*k)."""
    # TODO(synk): PyTorch spectral_norm persists `u` across forwards and does 1
    # iteration per call; here we re-run a fixed-seed 10-step power iteration.
    cout = weight_oihw.shape[0]
    w_mat = weight_oihw.reshape(cout, -1)
    u = jax.random.normal(jax.random.PRNGKey(42), (cout,), jnp.float32)
    u = u / (jnp.linalg.norm(u) + eps)

    def body(_, u):
        v = w_mat.T @ u
        v = v / (jnp.linalg.norm(v) + eps)
        u = w_mat @ v
        u = u / (jnp.linalg.norm(u) + eps)
        return u

    u = lax.fori_loop(0, n_iter, body, u)
    v = w_mat.T @ u
    v = v / (jnp.linalg.norm(v) + eps)
    sigma = u @ (w_mat @ v)
    return weight_oihw / sigma


def _banded_weights(w_hwio, width, dtype):
    """M[kh, s*Cin + c, j*Cout + o] = w[kh, kw, c, o] with s = j + kw - 1.

    Out-of-range source columns (s < 0 or s >= W) are simply omitted, which
    implements the conv's horizontal zero padding inside the weights.
    """
    _, _, cin, cout = w_hwio.shape
    cols = jnp.arange(width)
    bands = []
    for kh in range(KSIZE):
        m = jnp.zeros((width, cin, width, cout), w_hwio.dtype)
        for kw in range(KSIZE):
            sel = (cols[:, None] == (cols[None, :] + (kw - PAD))).astype(w_hwio.dtype)
            m = m + jnp.einsum("sj,co->scjo", sel, w_hwio[kh, kw])
        bands.append(m.reshape(width * cin, width * cout))
    return jnp.stack(bands, axis=0).astype(dtype)


def conv_block_forward(x_nchw, weight_oihw, bias, *, tile_rows=32,
                       compute_dtype=jnp.bfloat16):
    """ConvBlock forward: spectral-norm conv (3x3, s=1, p=1) + LeakyReLU(0.01)."""
    n, cin, h, w = x_nchw.shape
    cout = weight_oihw.shape[0]
    k = w * cin
    wcout = w * cout

    if h % HALO_BLOCK != 0:
        # TODO(synk): mask partial row tiles; current tiling needs H % 8 == 0.
        raise NotImplementedError("H must be a multiple of 8")
    th = max(HALO_BLOCK, min(tile_rows, h))
    th = max(t for t in range(HALO_BLOCK, th + 1, HALO_BLOCK) if h % t == 0)
    n_row_tiles = h // th
    halo_step = th // HALO_BLOCK

    # --- parameter prep (plain JAX glue, weight-sized) ---
    w_sn = spectral_normalize(weight_oihw)
    w_hwio = jnp.transpose(w_sn, (2, 3, 1, 0))               # (3, 3, Cin, Cout)
    m_band = _banded_weights(w_hwio, w, compute_dtype)       # (3, W*Cin, W*Cout)
    bias_row = jnp.tile(bias.astype(jnp.float32), w).reshape(1, wcout)

    # --- single input layout pass: NCHW -> rows of length W*Cin, plus 1 top /
    #     7 bottom zero rows (vertical conv padding + halo-block alignment).
    #     W padding is folded into m_band, so no separate NHWC pad round trip.
    x_rows = jnp.transpose(x_nchw, (0, 2, 3, 1)).reshape(n, h, k)
    x_rows = jnp.pad(x_rows, ((0, 0), (1, HALO_BLOCK - 1), (0, 0)))
    x_rows = x_rows.astype(compute_dtype)

    out_rows = pl.pallas_call(
        conv_block_kernel,
        out_shape=jax.ShapeDtypeStruct((n, h, wcout), jnp.float32),
        grid_spec=pltpu.PrefetchScalarGridSpec(
            num_scalar_prefetch=0,
            grid=(n, n_row_tiles),
            in_specs=[
                # main rows of this tile
                pl.BlockSpec((pl.Squeezed(), th, k), lambda b, r: (b, r, 0)),
                # sublane-aligned 8-row block just below the tile (halo rows)
                pl.BlockSpec((pl.Squeezed(), HALO_BLOCK, k),
                             lambda b, r: (b, (r + 1) * halo_step, 0)),
                # banded weights + bias: constant index_map -> VMEM-resident
                pl.BlockSpec((KSIZE, k, wcout), lambda b, r: (0, 0, 0)),
                pl.BlockSpec((1, wcout), lambda b, r: (0, 0)),
            ],
            out_specs=pl.BlockSpec((pl.Squeezed(), th, wcout),
                                   lambda b, r: (b, r, 0)),
        ),
        compiler_params=pltpu.CompilerParams(
            dimension_semantics=("parallel", "parallel"),
            vmem_limit_bytes=32 * 1024 * 1024,
        ),
    )(x_rows, x_rows, m_band, bias_row)

    # rows -> NCHW (one layout pass on y; required by the module's NCHW API)
    return jnp.transpose(out_rows.reshape(n, h, w, cout), (0, 3, 1, 2))


def reference_forward(x_nchw, weight_oihw, bias):
    """Plain-JAX (f32) reference for the correctness check."""
    w_sn = spectral_normalize(weight_oihw)
    y = lax.conv_general_dilated(
        x_nchw, w_sn, window_strides=(1, 1), padding=((PAD, PAD), (PAD, PAD)),
        dimension_numbers=("NCHW", "OIHW", "NCHW"),
    )
    y = y + bias.reshape(1, -1, 1, 1)
    return jnp.where(y >= 0.0, y, N_SLOPE * y)


if __name__ == "__main__":
    key = jax.random.PRNGKey(0)
    kx, kw, kb = jax.random.split(key, 3)

    N, Cin, Cout, H, W = 2, 4, 8, 16, 16

    x = jax.random.normal(kx, (N, Cin, H, W), jnp.float32)
    weight = jax.random.normal(kw, (Cout, Cin, KSIZE, KSIZE), jnp.float32)
    bias = 0.1 * jax.random.normal(kb, (Cout,), jnp.float32)

    out = conv_block_forward(x, weight, bias, tile_rows=8)
    out = jax.block_until_ready(out)

    ref = reference_forward(x, weight, bias)
    assert out.shape == (N, Cout, H, W)
    # bf16 operands with f32 accumulation vs the pure-f32 reference.
    assert jnp.allclose(out, ref, atol=5e-2, rtol=5e-2), float(
        jnp.max(jnp.abs(out - ref)))

    print("KERNEL_OK")
</pallas_src>

<mosaic_0001>
module attributes {stable_mosaic.version = 11 : i64} {
  func.func @conv_block_kernel(%arg0: i32, %arg1: i32, %arg2: memref<1x8x64xbf16, #tpu.memory_space<vmem>>, %arg3: memref<1x8x64xbf16, #tpu.memory_space<vmem>>, %arg4: memref<3x64x128xbf16, #tpu.memory_space<vmem>>, %arg5: memref<1x128xf32, #tpu.memory_space<vmem>>, %arg6: memref<1x8x128xf32, #tpu.memory_space<vmem>>) attributes {dimension_semantics = [#tpu.dimension_semantics<parallel>, #tpu.dimension_semantics<parallel>], iteration_bounds = array<i64: 2, 2>, scalar_prefetch = 0 : i64, scratch_operands = 0 : i64, tpu.core_type = #tpu.core_type<tc>, window_params = [{transform_indices = @transform_0, window_bounds = array<i64: 1, 8, 64>}, {transform_indices = @transform_1, window_bounds = array<i64: 1, 8, 64>}, {pipeline_mode = #tpu.pipeline_mode<synchronous>, transform_indices = @transform_2, window_bounds = array<i64: 3, 64, 128>}, {pipeline_mode = #tpu.pipeline_mode<synchronous>, transform_indices = @transform_3, window_bounds = array<i64: 1, 128>}, {transform_indices = @transform_4, window_bounds = array<i64: 1, 8, 128>}]} {
    %c0 = arith.constant 0 : index
    %c0_0 = arith.constant 0 : index
    %c0_1 = arith.constant 0 : index
    %0 = vector.load %arg2[%c0, %c0_0, %c0_1] : memref<1x8x64xbf16, #tpu.memory_space<vmem>>, vector<1x8x64xbf16>
    %1 = vector.shape_cast %0 : vector<1x8x64xbf16> to vector<8x64xbf16>
    %c0_2 = arith.constant 0 : index
    %c0_3 = arith.constant 0 : index
    %c0_4 = arith.constant 0 : index
    %2 = vector.load %arg3[%c0_2, %c0_3, %c0_4] : memref<1x8x64xbf16, #tpu.memory_space<vmem>>, vector<1x2x64xbf16>
    %3 = vector.shape_cast %2 : vector<1x2x64xbf16> to vector<2x64xbf16>
    %4 = tpu.concatenate %1, %3 in 0 : vector<8x64xbf16>, vector<2x64xbf16> -> vector<10x64xbf16>
    %c0_5 = arith.constant 0 : index
    %c0_6 = arith.constant 0 : index
    %5 = vector.load %arg5[%c0_5, %c0_6] : memref<1x128xf32, #tpu.memory_space<vmem>>, vector<1x128xf32>
    %6 = vector.shape_cast %5 : vector<1x128xf32> to vector<1x128xf32>
    %7 = vector.broadcast %6 : vector<1x128xf32> to vector<8x128xf32>
    %8 = vector.extract_strided_slice %4 {offsets = [0, 0], sizes = [8, 64], strides = [1, 1]} : vector<10x64xbf16> to vector<8x64xbf16>
    %c0_7 = arith.constant 0 : index
    %c0_8 = arith.constant 0 : index
    %c0_9 = arith.constant 0 : index
    %9 = vector.load %arg4[%c0_7, %c0_8, %c0_9] : memref<3x64x128xbf16, #tpu.memory_space<vmem>>, vector<1x64x128xbf16>
    %10 = vector.shape_cast %9 : vector<1x64x128xbf16> to vector<64x128xbf16>
    %cst = arith.constant dense<0.000000e+00> : vector<8x128xf32>
    %11 = tpu.matmul %8, %10, %cst {dimension_numbers = #tpu.dot_dimension_numbers<[1], [0], [0], [1], [0, 0, 1, 1], [], []>} : vector<8x64xbf16>, vector<64x128xbf16>, vector<8x128xf32> -> vector<8x128xf32>
    %12 = arith.addf %7, %11 : vector<8x128xf32>
    %13 = vector.extract_strided_slice %4 {offsets = [1, 0], sizes = [8, 64], strides = [1, 1]} : vector<10x64xbf16> to vector<8x64xbf16>
    %c1 = arith.constant 1 : index
    %c0_10 = arith.constant 0 : index
    %c0_11 = arith.constant 0 : index
    %14 = vector.load %arg4[%c1, %c0_10, %c0_11] : memref<3x64x128xbf16, #tpu.memory_space<vmem>>, vector<1x64x128xbf16>
    %15 = vector.shape_cast %14 : vector<1x64x128xbf16> to vector<64x128xbf16>
    %cst_12 = arith.constant dense<0.000000e+00> : vector<8x128xf32>
    %16 = tpu.matmul %13, %15, %cst_12 {dimension_numbers = #tpu.dot_dimension_numbers<[1], [0], [0], [1], [0, 0, 1, 1], [], []>} : vector<8x64xbf16>, vector<64x128xbf16>, vector<8x128xf32> -> vector<8x128xf32>
    %17 = arith.addf %12, %16 : vector<8x128xf32>
    %18 = vector.extract_strided_slice %4 {offsets = [2, 0], sizes = [8, 64], strides = [1, 1]} : vector<10x64xbf16> to vector<8x64xbf16>
    %c2 = arith.constant 2 : index
    %c0_13 = arith.constant 0 : index
    %c0_14 = arith.constant 0 : index
    %19 = vector.load %arg4[%c2, %c0_13, %c0_14] : memref<3x64x128xbf16, #tpu.memory_space<vmem>>, vector<1x64x128xbf16>
    %20 = vector.shape_cast %19 : vector<1x64x128xbf16> to vector<64x128xbf16>
    %cst_15 = arith.constant dense<0.000000e+00> : vector<8x128xf32>
    %21 = tpu.matmul %18, %20, %cst_15 {dimension_numbers = #tpu.dot_dimension_numbers<[1], [0], [0], [1], [0, 0, 1, 1], [], []>} : vector<8x64xbf16>, vector<64x128xbf16>, vector<8x128xf32> -> vector<8x128xf32>
    %22 = arith.addf %17, %21 : vector<8x128xf32>
    %cst_16 = arith.constant 0.000000e+00 : f32
    %23 = vector.broadcast %cst_16 : f32 to vector<8x128xf32>
    %24 = arith.cmpf oge, %22, %23 : vector<8x128xf32>
    %cst_17 = arith.constant 0.00999999977 : f32
    %25 = vector.broadcast %cst_17 : f32 to vector<8x128xf32>
    %26 = arith.mulf %25, %22 : vector<8x128xf32>
    %27 = arith.select %24, %22, %26 : vector<8x128xi1>, vector<8x128xf32>
    %c0_18 = arith.constant 0 : index
    %c0_19 = arith.constant 0 : index
    %c0_20 = arith.constant 0 : index
    %28 = vector.load %arg6[%c0_18, %c0_19, %c0_20] : memref<1x8x128xf32, #tpu.memory_space<vmem>>, vector<1x8x128xf32>
    %29 = vector.shape_cast %28 : vector<1x8x128xf32> to vector<8x128xf32>
    %30 = vector.shape_cast %27 : vector<8x128xf32> to vector<1x8x128xf32>
    tpu.vector_store %arg6[%c0_18, %c0_19, %c0_20], %30 {strides = array<i32>} : memref<1x8x128xf32, #tpu.memory_space<vmem>>, vector<1x8x128xf32>,
    return
  }
  func.func @transform_0(%arg0: i32, %arg1: i32) -> (i32, i32, i32) {
    %c0_i32 = arith.constant 0 : i32
    %c0_i32_0 = arith.constant 0 : i32
    return %arg0, %arg1, %c0_i32 : i32, i32, i32
  }
  func.func @transform_1(%arg0: i32, %arg1: i32) -> (i32, i32, i32) {
    %c1_i32 = arith.constant 1 : i32
    %0 = arith.addi %arg1, %c1_i32 : i32
    %c1_i32_0 = arith.constant 1 : i32
    %1 = arith.muli %0, %c1_i32_0 : i32
    %c0_i32 = arith.constant 0 : i32
    %c0_i32_1 = arith.constant 0 : i32
    return %arg0, %1, %c0_i32 : i32, i32, i32
  }
  func.func @transform_2(%arg0: i32, %arg1: i32) -> (i32, i32, i32) {
    %c0_i32 = arith.constant 0 : i32
    %c0_i32_0 = arith.constant 0 : i32
    %c0_i32_1 = arith.constant 0 : i32
    %c0_i32_2 = arith.constant 0 : i32
    return %c0_i32, %c0_i32_0, %c0_i32_1 : i32, i32, i32
  }
  func.func @transform_3(%arg0: i32, %arg1: i32) -> (i32, i32) {
    %c0_i32 = arith.constant 0 : i32
    %c0_i32_0 = arith.constant 0 : i32
    %c0_i32_1 = arith.constant 0 : i32
    return %c0_i32, %c0_i32_0 : i32, i32
  }
  func.func @transform_4(%arg0: i32, %arg1: i32) -> (i32, i32, i32) {
    %c0_i32 = arith.constant 0 : i32
    %c0_i32_0 = arith.constant 0 : i32
    return %arg0, %arg1, %c0_i32 : i32, i32, i32
  }
}

</mosaic_0001>

<llo_original>
// kernel: tpu_custom_call.1
$region0: #{tpu_custom_call.1}
  #allocation0 [shape = 'u32[]', space=smem, size = 0x4, offset = 0x4, fixed_abs, tag = 'smem constant byte address 0x4 - core index']
  #allocation1 [shape = 'u32[144,128]{1,0:T(1,128)}', space=vmem, size = 0x12000, scoped, tag = 'internal scratch']
  %s0 = inlined_call_operand.hbm [shape: bf16[2,24,64], index: 0, kind: input, shape index: {}]
  %s1 = inlined_call_operand.hbm [shape: bf16[2,24,64], index: 1, kind: input, shape index: {}]
  %s2 = inlined_call_operand.hbm [shape: bf16[3,64,128], index: 2, kind: input, shape index: {}]
  %s3 = inlined_call_operand.vmem [shape: f32[1,128], index: 3, kind: input, shape index: {}]
  %s4 = inlined_call_operand.hbm [shape: f32[2,16,128], index: 4, kind: output, shape index: {}]
  %s5 = sld [smem:[#allocation0]]
  $region61: #{tpu_custom_call.1} parent=0
    _
  %s7 = ssub.s32 1, %s5
  %s8 = scalar_select 0, %s7, %s5
  $region1: #{tpu_custom_call.1} parent=0
    #allocation2 [shape = 'u8[4096]{0}', space=vmem, size = 0x1000, scoped, tag = 'input window, operand 0']
    #allocation3 [shape = 's32[2]{0}', space=sflag, size = 0x8, scoped, tag = 'scoped memory for tpu_custom_call.1']
    #allocation4 [shape = 's32[2]{0}', space=sflag, size = 0x8, scoped, tag = 'scoped memory for tpu_custom_call.1']
    #allocation5 [shape = 'u8[4096]{0}', space=vmem, size = 0x1000, scoped, tag = 'input window, operand 1']
    #allocation6 [shape = 's32[2]{0}', space=sflag, size = 0x8, scoped, tag = 'scoped memory for tpu_custom_call.1']
    #allocation7 [shape = 'u8[49152]{0}', space=vmem, size = 0xc000, scoped, tag = 'input window, operand 2, single buffered']
    #allocation8 [shape = 'u8[8192]{0}', space=vmem, size = 0x2000, scoped, tag = 'output window, operand 0']
    %9 = vsyncpa [#allocation3], 0
    %s10 = scalar_lea.sflag [#allocation3], 1
    %11 = vsyncpa %s10, 0
    %12 = vsyncpa [#allocation6], 0
    %s13 = scalar_lea.sflag [#allocation6], 1
    %14 = vsyncpa %s13, 0
    %15 = vsyncpa [#allocation4], 0
    %s16 = scalar_lea.sflag [#allocation4], 1
    %17 = vsyncpa %s16, 0
    loop: start=0, step=1, limit=6
    $region2: #{tpu_custom_call.1} parent=1 // loop_pre_header
      _
    $region3: #{tpu_custom_call.1} parent=1 // loop_header
      %s19 = sphi 0, %s23
      %p20 = scmp.ge.s32.totalorder %s19, 6
      %s26 = sphi 0, %s38
      %s27 = sphi 0, %s34
      %s28 = sphi 0, %s26
      %s29 = sphi 0, %s27
      %s30 = sphi 0, %s28
      %s31 = sphi 0, %s29
      %s43 = sphi 0, %s45
      %s46 = sphi 0, %s43
      %s47 = sphi 0, %s46
      %s63 = sphi 0, %s47
      %s73 = sphi 0, %s75
      %s76 = sphi 0, %s73
      %s77 = sphi 0, %s76
      %s93 = sphi 0, %s77
      %s97 = sphi 0, %s97
      %s99 = sphi 0, %s97
      %s100 = sphi 0, %s99
      %s114 = sphi 0, %s100
      %s118 = sphi 0, %s118
      %s120 = sphi 0, %s118
      %s121 = sphi 0, %s120
      %s135 = sphi 0, %s121
      %s143 = sphi 0, %s145
      %s146 = sphi 0, %s143
      %s147 = sphi 0, %s146
      %s163 = sphi 0, %s147
    $region4: #{tpu_custom_call.1} parent=1 // loop_header_branch
      %22 = sbr.rel (%p20) target = $region8
    $region5: #{tpu_custom_call.1} parent=1 // loop_body
      %s24 = ssub.s32 %s19, 1
      %s25 = ssub.s32 %s19, 2
      %s32 = sadd.s32 1, %s27
      %p33 = scmp.ge.s32.totalorder %s32, 2
      %s34 = scalar_select %p33, 0, %s32
      %s35 = sadd.s32 1, %s26
      %s36 = scalar_select %p33, %s35, %s26
      %p37 = scmp.ge.s32.totalorder %s36, 2
      %s38 = scalar_select %p37, 0, %s36
      %s39 = ssub.s32 %s26, %s38
      %s40 = ssub.s32 %s27, %s34
      %s41 = sor.u32 %s39, %s40
      %p42 = scmp.eq.s32.totalorder %s41, 0
      %s44 = sadd.s32 %s43, 1
      %s45 = scalar_select %p42, %s43, %s44
      %p48 = pneg %p42
      %p49 = scmp.eq.s32.totalorder %s19, 3
      %p50 = por %p48, %p49
      %p51 = scmp.ne.s32.totalorder %s43, %s46
      %p52 = scmp.eq.s32.totalorder %s19, 0
      %p53 = por %p51, %p52
      %p54 = scmp.ne.s32.totalorder %s43, %s46
      %p55 = scmp.eq.s32.totalorder %s24, 3
      %p56 = por %p54, %p55
      %p57 = scmp.ne.s32.totalorder %s46, %s47
      %p58 = scmp.eq.s32.totalorder %s24, 0
      %p59 = por %p57, %p58
      %p60 = scmp.ne.s32.totalorder %s46, %s47
      %p61 = scmp.eq.s32.totalorder %s25, 3
      %p62 = por %p60, %p61
      %p64 = scmp.ne.s32.totalorder %s47, %s63
      %p65 = scmp.eq.s32.totalorder %s25, 0
      %p66 = por %p64, %p65
      %s67 = sadd.s32 %s27, 1
      %s68 = sadd.s32 %s34, 1
      %s69 = ssub.s32 %s26, %s38
      %s70 = ssub.s32 %s67, %s68
      %s71 = sor.u32 %s69, %s70
      %p72 = scmp.eq.s32.totalorder %s71, 0
      %s74 = sadd.s32 %s73, 1
      %s75 = scalar_select %p72, %s73, %s74
      %p78 = pneg %p72
      %p79 = scmp.eq.s32.totalorder %s19, 3
      %p80 = por %p78, %p79
      %p81 = scmp.ne.s32.totalorder %s73, %s76
      %p82 = scmp.eq.s32.totalorder %s19, 0
      %p83 = por %p81, %p82
      %p84 = scmp.ne.s32.totalorder %s73, %s76
      %p85 = scmp.eq.s32.totalorder %s24, 3
      %p86 = por %p84, %p85
      %p87 = scmp.ne.s32.totalorder %s76, %s77
      %p88 = scmp.eq.s32.totalorder %s24, 0
      %p89 = por %p87, %p88
      %p90 = scmp.ne.s32.totalorder %s76, %s77
      %p91 = scmp.eq.s32.totalorder %s25, 3
      %p92 = por %p90, %p91
      %p94 = scmp.ne.s32.totalorder %s77, %s93
      %p95 = scmp.eq.s32.totalorder %s25, 0
      %p96 = por %p94, %p95
      %s98 = sadd.s32 %s97, 1
      %p101 = scmp.eq.s32.totalorder %s19, 3
      %p102 = scmp.ne.s32.totalorder %s97, %s99
      %p103 = scmp.eq.s32.totalorder %s19, 0
      %p104 = por %p102, %p103
      %p105 = scmp.ne.s32.totalorder %s97, %s99
      %p106 = scmp.eq.s32.totalorder %s24, 3
      %p107 = por %p105, %p106
      %p108 = scmp.ne.s32.totalorder %s99, %s100
      %p109 = scmp.eq.s32.totalorder %s24, 0
      %p110 = por %p108, %p109
      %p111 = scmp.ne.s32.totalorder %s99, %s100
      %p112 = scmp.eq.s32.totalorder %s25, 3
      %p113 = por %p111, %p112
      %p115 = scmp.ne.s32.totalorder %s100, %s114
      %p116 = scmp.eq.s32.totalorder %s25, 0
      %p117 = por %p115, %p116
      %s119 = sadd.s32 %s118, 1
      %p122 = scmp.eq.s32.totalorder %s19, 3
      %p123 = scmp.ne.s32.totalorder %s118, %s120
      %p124 = scmp.eq.s32.totalorder %s19, 0
      %p125 = por %p123, %p124
      %p126 = scmp.ne.s32.totalorder %s118, %s120
      %p127 = scmp.eq.s32.totalorder %s24, 3
      %p128 = por %p126, %p127
      %p129 = scmp.ne.s32.totalorder %s120, %s121
      %p130 = scmp.eq.s32.totalorder %s24, 0
      %p131 = por %p129, %p130
      %p132 = scmp.ne.s32.totalorder %s120, %s121
      %p133 = scmp.eq.s32.totalorder %s25, 3
      %p134 = por %p132, %p133
      %p136 = scmp.ne.s32.totalorder %s121, %s135
      %p137 = scmp.eq.s32.totalorder %s25, 0
      %p138 = por %p136, %p137
      %s139 = ssub.s32 %s26, %s38
      %s140 = ssub.s32 %s27, %s34
      %s141 = sor.u32 %s139, %s140
      %p142 = scmp.eq.s32.totalorder %s141, 0
      %s144 = sadd.s32 %s143, 1
      %s145 = scalar_select %p142, %s143, %s144
      %p148 = pneg %p142
      %p149 = scmp.eq.s32.totalorder %s19, 3
      %p150 = por %p148, %p149
      %p151 = scmp.ne.s32.totalorder %s143, %s146
      %p152 = scmp.eq.s32.totalorder %s19, 0
      %p153 = por %p151, %p152
      %p154 = scmp.ne.s32.totalorder %s143, %s146
      %p155 = scmp.eq.s32.totalorder %s24, 3
      %p156 = por %p154, %p155
      %p157 = scmp.ne.s32.totalorder %s146, %s147
      %p158 = scmp.eq.s32.totalorder %s24, 0
      %p159 = por %p157, %p158
      %p160 = scmp.ne.s32.totalorder %s146, %s147
      %p161 = scmp.eq.s32.totalorder %s25, 3
      %p162 = por %p160, %p161
      %p164 = scmp.ne.s32.totalorder %s147, %s163
      %p165 = scmp.eq.s32.totalorder %s25, 0
      %p166 = por %p164, %p165
      %p167 = scmp.le.s32.totalorder 1, %s19
      %p168 = scmp.lt.s32.totalorder %s19, 5
      %p169 = pnand %p167, %p168
      %p170 = pneg %p169
      // Predicated region
      $region9: #{tpu_custom_call.1} parent=5 // pred_check
        _
      $region10: #{tpu_custom_call.1} parent=5 // pred_check_branch
        %172 = sbr.rel (%p169) target = $region12
      $region11: #{tpu_custom_call.1} parent=5 // pred_region
        %s173 = ssub.s32 %s19, 1
        // Predicated region
        $region13: #{tpu_custom_call.1} parent=11 // pred_check
          %p174 = pneg %p110
        $region14: #{tpu_custom_call.1} parent=11 // pred_check_branch
          %176 = sbr.rel (%p174) target = $region16
        $region15: #{tpu_custom_call.1} parent=11 // pred_region
          %s178 = ssub.s32 1536, 1536
          %179 = vsyncadd [#allocation6], %s178
          %s180 = sshll.u32 [#allocation7], 4
          %s181 = int_to_ptr.vmem [resolvable:$true] %s180
          %186 = dma.hbm_to_vmem [thread:$0]  %s2, 1536, %s181, [#allocation6], 64, 64, 4
        $region16: #{tpu_custom_call.1} parent=11 // pred_fallthru
          _
        // Predicated region
        $region17: #{tpu_custom_call.1} parent=11 // pred_check
          %p187 = pneg %p131
        $region18: #{tpu_custom_call.1} parent=11 // pred_check_branch
          %189 = sbr.rel (%p187) target = $region20
        $region19: #{tpu_custom_call.1} parent=11 // pred_region
          _
        $region20: #{tpu_custom_call.1} parent=11 // pred_fallthru
          _
      $region12: #{tpu_custom_call.1} parent=5 // pred_fallthru
        _
      %p190 = scmp.lt.s32.totalorder %s19, 4
      // Predicated region
      $region21: #{tpu_custom_call.1} parent=5 // pred_check
        %p191 = pneg %p190
      $region22: #{tpu_custom_call.1} parent=5 // pred_check_branch
        %193 = sbr.rel (%p191) target = $region24
      $region23: #{tpu_custom_call.1} parent=5 // pred_region
        // Predicated region
        $region25: #{tpu_custom_call.1} parent=23 // pred_check
          %p194 = pneg %p53
        $region26: #{tpu_custom_call.1} parent=23 // pred_check_branch
          %196 = sbr.rel (%p194) target = $region28
        $region27: #{tpu_custom_call.1} parent=23 // pred_region
          %s197 = sand.u32 %s43, 1
          %s198 = scalar_lea.sflag [#allocation3], %s197
          %s199 = sand.u32 %s43, 1
          %s200 = smul.addr %s199, 4
          %s201 = scalar_lea.vmem [#allocation2], %s200
          %s203 = ssub.s32 64, 64
          %204 = vsyncadd %s198, %s203
          %s205 = smul.addr %s26, 3
          %s206 = sadd.s32 %s27, %s205
          %s207 = smul.addr %s206, 64
          %s208 = scalar_lea.hbm %s0, %s207
          %s210 = sshll.u32 %s201, 4
          %s211 = int_to_ptr.vmem [resolvable:$true] %s210
          %213 = dma.hbm_to_vmem [thread:$0]  %s208, 64, %s211, %s198
        $region28: #{tpu_custom_call.1} parent=23 // pred_fallthru
          _
        // Predicated region
        $region29: #{tpu_custom_call.1} parent=23 // pred_check
          %p214 = pneg %p83
        $region30: #{tpu_custom_call.1} parent=23 // pred_check_branch
          %216 = sbr.rel (%p214) target = $region32
        $region31: #{tpu_custom_call.1} parent=23 // pred_region
          %s217 = sand.u32 %s19, 1
          %s218 = scalar_lea.sflag [#allocation6], %s217
          %s219 = sand.u32 %s73, 1
          %s220 = smul.addr %s219, 4
          %s221 = scalar_lea.vmem [#allocation5], %s220
          %s222 = sadd.s32 %s27, 1
          %s224 = ssub.s32 64, 64
          %225 = vsyncadd %s218, %s224
          %s226 = smul.addr %s26, 3
          %s227 = sadd.s32 %s222, %s226
          %s228 = smul.addr %s227, 64
          %s229 = scalar_lea.hbm %s1, %s228
          %s231 = sshll.u32 %s221, 4
          %s232 = int_to_ptr.vmem [resolvable:$true] %s231
          %234 = dma.hbm_to_vmem [thread:$0]  %s229, 64, %s232, %s218
        $region32: #{tpu_custom_call.1} parent=23 // pred_fallthru
          _
      $region24: #{tpu_custom_call.1} parent=5 // pred_fallthru
        _
      %p235 = scmp.le.s32.totalorder 1, %s19
      %p236 = scmp.lt.s32.totalorder %s19, 5
      %p237 = pnand %p235, %p236
      %p238 = pneg %p237
      // Predicated region
      $region33: #{tpu_custom_call.1} parent=5 // pred_check
        _
      $region34: #{tpu_custom_call.1} parent=5 // pred_check_branch
        %240 = sbr.rel (%p237) target = $region36
      $region35: #{tpu_custom_call.1} parent=5 // pred_region
        %s241 = ssub.s32 %s19, 1
        %s242 = sand.u32 %s46, 1
        %s243 = scalar_lea.sflag [#allocation3], %s242
        %s244 = sand.u32 %s46, 1
        %s245 = smul.addr %s244, 4
        %s246 = scalar_lea.vmem [#allocation2], %s245
        // Predicated region
        $region37: #{tpu_custom_call.1} parent=35 // pred_check
          %p247 = pneg %p59
        $region38: #{tpu_custom_call.1} parent=35 // pred_check_branch
          %249 = sbr.rel (%p247) target = $region40
        $region39: #{tpu_custom_call.1} parent=35 // pred_region
          %250 = dma.done %s243, 64
        $region40: #{tpu_custom_call.1} parent=35 // pred_fallthru
          _
        %s251 = sand.u32 %s24, 1
        %s252 = scalar_lea.sflag [#allocation6], %s251
        %s253 = sand.u32 %s76, 1
        %s254 = smul.addr %s253, 4
        %s255 = scalar_lea.vmem [#allocation5], %s254
        // Predicated region
        $region41: #{tpu_custom_call.1} parent=35 // pred_check
          %p256 = pneg %p89
        $region42: #{tpu_custom_call.1} parent=35 // pred_check_branch
          %258 = sbr.rel (%p256) target = $region44
        $region43: #{tpu_custom_call.1} parent=35 // pred_region
          %259 = dma.done %s252, 64
        $region44: #{tpu_custom_call.1} parent=35 // pred_fallthru
          _
        // Predicated region
        $region45: #{tpu_custom_call.1} parent=35 // pred_check
          %p260 = pneg %p110
        $region46: #{tpu_custom_call.1} parent=35 // pred_check_branch
          %262 = sbr.rel (%p260) target = $region48
        $region47: #{tpu_custom_call.1} parent=35 // pred_region
          %263 = dma.done [#allocation6], 1536
        $region48: #{tpu_custom_call.1} parent=35 // pred_fallthru
          _
        %s264 = sand.u32 %s46, 1
        %s265 = scalar_lea.sflag [#allocation3], %s264
        %s266 = sand.u32 %s46, 1
        %s267 = smul.addr %s266, 4
        %s268 = scalar_lea.vmem [#allocation2], %s267
        %p269 = pneg %p59
        %p270 = pneg %p56
        %s271 = sand.u32 %s24, 1
        %s272 = scalar_lea.sflag [#allocation6], %s271
        %s273 = sand.u32 %s76, 1
        %s274 = smul.addr %s273, 4
        %s275 = scalar_lea.vmem [#allocation5], %s274
        %p276 = pneg %p89
        %p277 = pneg %p86
        %p278 = pneg %p110
        %p279 = pneg %p107
        %p280 = pneg %p131
        %p281 = pneg %p128
        %p282 = pneg %p159
        %p283 = pneg %p156
        %s284 = sand.u32 %s146, 1
        %s285 = scalar_lea.sflag [#allocation4], %s284
        %s286 = sand.u32 %s146, 1
        %s287 = smul.addr %s286, 8
        %s288 = scalar_lea.vmem [#allocation8], %s287
        %s289 = sadd.s32 %s29, 1
        %v291 = vld [vmem:[%s246] sm:$0xf]
        %v292 = vld [vmem:[%s255] sm:$0x1]
        %v294 = vunpack.c.l.b16 %v292
        %v295 = vpack.c.b16 %v294, %v294
        %vm296 = vcmask 1043456
        %v299 = vsel %vm296, %v291, %v295
        %v300 = vld [vmem:[%s3] sm:$0x1]
        %v302 = vlaneseq
        %v303 = vshrl.u32 %v302, 7
        %v304 = vsub.s32 0, %v303
        %v305 = vrot.slane %v300, %v304
        %v307 = vld [vmem:[#allocation7] sm:$0xf]
        %v308 = vld [vmem:[#allocation7 + $0x4] sm:$0xf]
        %v309 = vld [vmem:[#allocation7 + $0x8] sm:$0xf]
        %v310 = vld [vmem:[#allocation7 + $0xc] sm:$0xf]
        %v311 = vld [vmem:[#allocation7 + $0x10] sm:$0xf]
        %v312 = vld [vmem:[#allocation7 + $0x14] sm:$0xf]
        %v313 = vld [vmem:[#allocation7 + $0x18] sm:$0xf]
        %v314 = vld [vmem:[#allocation7 + $0x1c] sm:$0xf]
        %v323 = vunpack.c.l.b16 %v307
        %v324 = vunpack.c.l.b16 %v308
        %v325 = vunpack.c.l.b16 %v309
        %v326 = vunpack.c.l.b16 %v310
        %v327 = vunpack.c.l.b16 %v311
        %v328 = vunpack.c.l.b16 %v312
        %v329 = vunpack.c.l.b16 %v313
        %v330 = vunpack.c.l.b16 %v314
        %v331 = vpack.c.b16 %v324, %v323
        %v332 = vpack.c.b16 %v326, %v325
        %v333 = vpack.c.b16 %v328, %v327
        %v334 = vpack.c.b16 %v330, %v329
        %vm339 = vcmask 523264
        %v340 = vsel %vm339, %v299, 0
        %342 = vmatprep.subr.bf16.mxu0 0
        %343 = vmatpush1.bf16.msra.mxu0 %v331
        %344 = vmatprep.subr.bf16.mxu0 0
        %345 = vmatpush1.bf16.msra.mxu0 %v332
        %346 = vmatprep.subr.bf16.mxu0 0
        %347 = vmatpush1.bf16.msra.mxu0 %v333
        %348 = vmatprep.subr.bf16.mxu0 0
        %349 = vmatpush1.bf16.msra.mxu0 %v334
        %350 = vmatprep.subr.bf16.mxu0 0
        %351 = vmatpush1.bf16.msra.mxu0 0
        %352 = vmatprep.subr.bf16.mxu0 0
        %353 = vmatpush1.bf16.msra.mxu0 0
        %354 = vmatprep.subr.bf16.mxu0 0
        %355 = vmatpush1.bf16.msra.mxu0 0
        %356 = vmatprep.subr.bf16.mxu0 0
        %357 = vmatpush1.bf16.msra.mxu0 0
        %358 = vmatprep.subr.bf16.mxu0 0
        %359 = vmatpush1.bf16.msra.mxu0 0
        %360 = vmatprep.subr.bf16.mxu0 0
        %361 = vmatpush1.bf16.msra.mxu0 0
        %362 = vmatprep.subr.bf16.mxu0 0
        %363 = vmatpush1.bf16.msra.mxu0 0
        %364 = vmatprep.subr.bf16.mxu0 0
        %365 = vmatpush1.bf16.msra.mxu0 0
        %366 = vmatprep.subr.bf16.mxu0 0
        %367 = vmatpush1.bf16.msra.mxu0 0
        %368 = vmatprep.subr.bf16.mxu0 0
        %369 = vmatpush1.bf16.msra.mxu0 0
        %370 = vmatprep.subr.bf16.mxu0 0
        %371 = vmatpush1.bf16.msra.mxu0 0
        %372 = vmatprep.subr.bf16.mxu0 0
        %373 = vmatpush1.bf16.msra.mxu0 0
        %374 = vmatprep.mubr.bf16.mxu0 0
        %375 = vmatmul.mubr.bf16.gmra.mrb[0].mxu0 %v340
        %v376 = vpop.f32.mrb[0].mxu0
        %v377 = vadd.f32 0.0, %v376
        %v378 = vpop.f32.mrb[0].mxu0
        %v379 = vpop.f32.mrb[0].mxu0
        %v380 = vpop.f32.mrb[0].mxu0
        %381 = vdwg.mxu0
        %v382 = vadd.f32 %v305, %v377
        %s383 = scalar_lea.vmem [#allocation7], 32
        %v384 = vld [vmem:[%s383] sm:$0xf]
        %v385 = vld [vmem:[%s383 + $0x4] sm:$0xf]
        %v386 = vld [vmem:[%s383 + $0x8] sm:$0xf]
        %v387 = vld [vmem:[%s383 + $0xc] sm:$0xf]
        %v388 = vld [vmem:[%s383 + $0x10] sm:$0xf]
        %v389 = vld [vmem:[%s383 + $0x14] sm:$0xf]
        %v390 = vld [vmem:[%s383 + $0x18] sm:$0xf]
        %v391 = vld [vmem:[%s383 + $0x1c] sm:$0xf]
        %v392 = vshrl.u32 %v299, 16
        %v394 = vshll.u32 %v299, 16
        %v396 = vrot.slane %v394, 1
        %v397 = vor.u32 %v392, %v396
        %v406 = vunpack.c.l.b16 %v384
        %v407 = vunpack.c.l.b16 %v385
        %v408 = vunpack.c.l.b16 %v386
        %v409 = vunpack.c.l.b16 %v387
        %v410 = vunpack.c.l.b16 %v388
        %v411 = vunpack.c.l.b16 %v389
        %v412 = vunpack.c.l.b16 %v390
        %v413 = vunpack.c.l.b16 %v391
        %v414 = vpack.c.b16 %v407, %v406
        %v415 = vpack.c.b16 %v409, %v408
        %v416 = vpack.c.b16 %v411, %v410
        %v417 = vpack.c.b16 %v413, %v412
        %v423 = vsel %vm339, %v397, 0
        %425 = vmatprep.subr.bf16.mxu0 0
        %426 = vmatpush1.bf16.msra.mxu0 %v414
        %427 = vmatprep.subr.bf16.mxu0 0
        %428 = vmatpush1.bf16.msra.mxu0 %v415
        %429 = vmatprep.subr.bf16.mxu0 0
        %430 = vmatpush1.bf16.msra.mxu0 %v416
        %431 = vmatprep.subr.bf16.mxu0 0
        %432 = vmatpush1.bf16.msra.mxu0 %v417
        %433 = vmatprep.subr.bf16.mxu0 0
        %434 = vmatpush1.bf16.msra.mxu0 0
        %435 = vmatprep.subr.bf16.mxu0 0
        %436 = vmatpush1.bf16.msra.mxu0 0
        %437 = vmatprep.subr.bf16.mxu0 0
        %438 = vmatpush1.bf16.msra.mxu0 0
        %439 = vmatprep.subr.bf16.mxu0 0
        %440 = vmatpush1.bf16.msra.mxu0 0
        %441 = vmatprep.subr.bf16.mxu0 0
        %442 = vmatpush1.bf16.msra.mxu0 0
        %443 = vmatprep.subr.bf16.mxu0 0
        %444 = vmatpush1.bf16.msra.mxu0 0
        %445 = vmatprep.subr.bf16.mxu0 0
        %446 = vmatpush1.bf16.msra.mxu0 0
        %447 = vmatprep.subr.bf16.mxu0 0
        %448 = vmatpush1.bf16.msra.mxu0 0
        %449 = vmatprep.subr.bf16.mxu0 0
        %450 = vmatpush1.bf16.msra.mxu0 0
        %451 = vmatprep.subr.bf16.mxu0 0
        %452 = vmatpush1.bf16.msra.mxu0 0
        %453 = vmatprep.subr.bf16.mxu0 0
        %454 = vmatpush1.bf16.msra.mxu0 0
        %455 = vmatprep.subr.bf16.mxu0 0
        %456 = vmatpush1.bf16.msra.mxu0 0
        %457 = vmatprep.mubr.bf16.mxu0 0
        %458 = vmatmul.mubr.bf16.gmra.mrb[0].mxu0 %v423
        %v459 = vpop.f32.mrb[0].mxu0
        %v460 = vadd.f32 0.0, %v459
        %v461 = vpop.f32.mrb[0].mxu0
        %v462 = vpop.f32.mrb[0].mxu0
        %v463 = vpop.f32.mrb[0].mxu0
        %464 = vdwg.mxu0
        %v465 = vadd.f32 %v382, %v460
        %s466 = scalar_lea.vmem [#allocation7], 64
        %v467 = vld [vmem:[%s466] sm:$0xf]
        %v468 = vld [vmem:[%s466 + $0x4] sm:$0xf]
        %v469 = vld [vmem:[%s466 + $0x8] sm:$0xf]
        %v470 = vld [vmem:[%s466 + $0xc] sm:$0xf]
        %v471 = vld [vmem:[%s466 + $0x10] sm:$0xf]
        %v472 = vld [vmem:[%s466 + $0x14] sm:$0xf]
        %v473 = vld [vmem:[%s466 + $0x18] sm:$0xf]
        %v474 = vld [vmem:[%s466 + $0x1c] sm:$0xf]
        %v476 = vrot.slane %v299, 1
        %v485 = vunpack.c.l.b16 %v467
        %v486 = vunpack.c.l.b16 %v468
        %v487 = vunpack.c.l.b16 %v469
        %v488 = vunpack.c.l.b16 %v470
        %v489 = vunpack.c.l.b16 %v471
        %v490 = vunpack.c.l.b16 %v472
        %v491 = vunpack.c.l.b16 %v473
        %v492 = vunpack.c.l.b16 %v474
        %v493 = vpack.c.b16 %v486, %v485
        %v494 = vpack.c.b16 %v488, %v487
        %v495 = vpack.c.b16 %v490, %v489
        %v496 = vpack.c.b16 %v492, %v491
        %v502 = vsel %vm339, %v476, 0
        %504 = vmatprep.subr.bf16.mxu0 0
        %505 = vmatpush1.bf16.msra.mxu0 %v493
        %506 = vmatprep.subr.bf16.mxu0 0
        %507 = vmatpush1.bf16.msra.mxu0 %v494
        %508 = vmatprep.subr.bf16.mxu0 0
        %509 = vmatpush1.bf16.msra.mxu0 %v495
        %510 = vmatprep.subr.bf16.mxu0 0
        %511 = vmatpush1.bf16.msra.mxu0 %v496
        %512 = vmatprep.subr.bf16.mxu0 0
        %513 = vmatpush1.bf16.msra.mxu0 0
        %514 = vmatprep.subr.bf16.mxu0 0
        %515 = vmatpush1.bf16.msra.mxu0 0
        %516 = vmatprep.subr.bf16.mxu0 0
        %517 = vmatpush1.bf16.msra.mxu0 0
        %518 = vmatprep.subr.bf16.mxu0 0
        %519 = vmatpush1.bf16.msra.mxu0 0
        %520 = vmatprep.subr.bf16.mxu0 0
        %521 = vmatpush1.bf16.msra.mxu0 0
        %522 = vmatprep.subr.bf16.mxu0 0
        %523 = vmatpush1.bf16.msra.mxu0 0
        %524 = vmatprep.subr.bf16.mxu0 0
        %525 = vmatpush1.bf16.msra.mxu0 0
        %526 = vmatprep.subr.bf16.mxu0 0
        %527 = vmatpush1.bf16.msra.mxu0 0
        %528 = vmatprep.subr.bf16.mxu0 0
        %529 = vmatpush1.bf16.msra.mxu0 0
        %530 = vmatprep.subr.bf16.mxu0 0
        %531 = vmatpush1.bf16.msra.mxu0 0
        %532 = vmatprep.subr.bf16.mxu0 0
        %533 = vmatpush1.bf16.msra.mxu0 0
        %534 = vmatprep.subr.bf16.mxu0 0
        %535 = vmatpush1.bf16.msra.mxu0 0
        %536 = vmatprep.mubr.bf16.mxu0 0
        %537 = vmatmul.mubr.bf16.gmra.mrb[0].mxu0 %v502
        %v538 = vpop.f32.mrb[0].mxu0
        %v539 = vadd.f32 0.0, %v538
        %v540 = vpop.f32.mrb[0].mxu0
        %v541 = vpop.f32.mrb[0].mxu0
        %v542 = vpop.f32.mrb[0].mxu0
        %543 = vdwg.mxu0
        %v544 = vadd.f32 %v465, %v539
        %vm545 = vcmp.ge.f32.partialorder %v544, 0.0
        %v546 = vmul.f32 %v544, 0.01
        %v547 = vsel %vm545, %v544, %v546
        %548 = vst [vmem:[%s288] sm:$0xff] %v547
        %s549 = sand.u32 %s146, 1
        %s550 = scalar_lea.sflag [#allocation4], %s549
        %s551 = sand.u32 %s146, 1
        %s552 = smul.addr %s551, 8
        %s553 = scalar_lea.vmem [#allocation8], %s552
        // Predicated region
        $region49: #{tpu_custom_call.1} parent=35 // pred_check
          %p554 = pneg %p156
        $region50: #{tpu_custom_call.1} parent=35 // pred_check_branch
          %556 = sbr.rel (%p554) target = $region52
        $region51: #{tpu_custom_call.1} parent=35 // pred_region
          %s558 = ssub.s32 128, 128
          %559 = vsyncadd %s550, %s558
          %s560 = smul.addr %s28, 2
          %s561 = sadd.s32 %s29, %s560
          %s562 = smul.addr %s561, 128
          %s563 = scalar_lea.hbm %s4, %s562
          %s565 = sshll.u32 %s553, 4
          %s566 = int_to_ptr.vmem [resolvable:$true] %s565
          %568 = dma.vmem_to_hbm [thread:$0]  %s566, 128, %s563, %s550
        $region52: #{tpu_custom_call.1} parent=35 // pred_fallthru
          _
      $region36: #{tpu_custom_call.1} parent=5 // pred_fallthru
        _
      %p569 = scmp.le.s32.totalorder 2, %s19
      // Predicated region
      $region53: #{tpu_custom_call.1} parent=5 // pred_check
        %p570 = pneg %p569
      $region54: #{tpu_custom_call.1} parent=5 // pred_check_branch
        %572 = sbr.rel (%p570) target = $region56
      $region55: #{tpu_custom_call.1} parent=5 // pred_region
        %s573 = ssub.s32 %s19, 2
        // Predicated region
        $region57: #{tpu_custom_call.1} parent=55 // pred_check
          %p574 = pneg %p162
        $region58: #{tpu_custom_call.1} parent=55 // pred_check_branch
          %576 = sbr.rel (%p574) target = $region60
        $region59: #{tpu_custom_call.1} parent=55 // pred_region
          %s577 = sand.u32 %s147, 1
          %s578 = scalar_lea.sflag [#allocation4], %s577
          %s579 = sand.u32 %s147, 1
          %s580 = smul.addr %s579, 8
          %s581 = scalar_lea.vmem [#allocation8], %s580
          %582 = dma.done %s578, 128
        $region60: #{tpu_custom_call.1} parent=55 // pred_fallthru
          _
      $region56: #{tpu_custom_call.1} parent=5 // pred_fallthru
        _
    $region6: #{tpu_custom_call.1} parent=1 // loop_footer
      %s23 = sadd.s32 1, %s19
    $region7: #{tpu_custom_call.1} parent=1 // loop_footer_branch
      %18 = sbr.rel target = $region3
    $region8: #{tpu_custom_call.1} parent=1 // loop_exit
      _
    %583 = vsyncpa [#allocation3], 1
    %s584 = scalar_lea.sflag [#allocation3], 1
    %585 = vsyncpa %s584, 1
    %586 = vsyncpa [#allocation6], 1
    %s587 = scalar_lea.sflag [#allocation6], 1
    %588 = vsyncpa %s587, 1
    %589 = vsyncpa [#allocation4], 1
    %s590 = scalar_lea.sflag [#allocation4], 1
    %591 = vsyncpa %s590, 1

</llo_original>
